<compile_context>
chip_gen: v7x
topology: tpu7x:2x2x1
jax: 0.10.0
libtpu: 0.0.40
codegen_flags: <defaults>
</compile_context>

<pallas_src>
import math

import jax
import jax.numpy as jnp
from jax.experimental import pallas as pl
from jax.experimental.pallas import tpu as pltpu

S1 = 11 * 11 * 5 + 1   # 606
S2 = 10
S3 = 5


def _round_up(n, m):
    return (n + m - 1) // m * m


def brain2_kernel(x_ref, w1_ref, b1_ref, w2_ref, b2_ref, o_ref):
    # ---- layer 1: h1 = sigmoid(x @ W1 + b1) --------------------------------
    # x tile arrives as f32 (streamed from HBM untouched); cast to bf16 only
    # for the MXU input -- accumulation and everything after stays f32.
    x_bf = x_ref[...].astype(jnp.bfloat16)                     # (TB, 606)
    z1 = jnp.dot(x_bf, w1_ref[...], preferred_element_type=jnp.float32)
    h1 = jax.nn.sigmoid(z1 + b1_ref[...])                      # (TB, 10) f32

    # ---- layer 2: h2 = sigmoid(h1 @ W2 + b2) -------------------------------
    z2 = jnp.dot(h1, w2_ref[...], preferred_element_type=jnp.float32)
    h2 = jax.nn.sigmoid(z2 + b2_ref[...])                      # (TB, 5) f32

    # ---- numerically-stable softmax over the 5 real lanes ------------------
    # Exact divide (not approx reciprocal) so probabilities sum to 1.
    m = jnp.max(h2, axis=-1, keepdims=True)
    e = jnp.exp(h2 - m)
    denom = jnp.sum(e, axis=-1, keepdims=True)
    o_ref[...] = (e / denom).astype(o_ref.dtype)


def brain2_forward(x, w1, b1, w2, b2, *, block_rows=1024):
    """x: (B, 606) f32; w1: (606, 10); b1: (10,); w2: (10, 5); b2: (5,) -> (B, 5)."""
    B = x.shape[0]
    assert x.shape[1] == S1

    # Batch tile selection: balanced tiles, multiple of 8 sublanes (f32 input).
    # Force >= 2 grid steps once B is big enough so the v7x megacore has two
    # tiles to shard across its TensorCores.
    num_tiles = pl.cdiv(B, block_rows)
    if num_tiles == 1 and B >= 256:
        num_tiles = 2
    TB = _round_up(pl.cdiv(B, num_tiles), 8)
    grid = (pl.cdiv(B, TB),)

    # Tiny, one-time weight/bias layout prep (all stay resident in VMEM).
    w1_bf = w1.astype(jnp.bfloat16)                      # (606, 10) bf16 (MXU input)
    b1r = b1.reshape(1, S2).astype(jnp.float32)          # (1, 10)
    w2r = w2.astype(jnp.float32)                         # (10, 5)
    b2r = b2.reshape(1, S3).astype(jnp.float32)          # (1, 5)

    cost = pl.CostEstimate(
        flops=2 * B * S1 * S2 + 2 * B * S2 * S3,
        transcendentals=B * (S2 + 2 * S3),               # sigmoids + softmax exp
        bytes_accessed=B * (S1 * 4 + S3 * 4) + S1 * S2 * 2 + S2 * S3 * 4,
    )

    return pl.pallas_call(
        brain2_kernel,
        out_shape=jax.ShapeDtypeStruct((B, S3), jnp.float32),
        grid_spec=pltpu.PrefetchScalarGridSpec(
            num_scalar_prefetch=0,
            grid=grid,
            in_specs=[
                pl.BlockSpec((TB, S1), lambda i: (i, 0)),   # x: streamed f32 per tile
                pl.BlockSpec((S1, S2), lambda i: (0, 0)),   # W1: resident
                pl.BlockSpec((1, S2), lambda i: (0, 0)),    # b1: resident
                pl.BlockSpec((S2, S3), lambda i: (0, 0)),   # W2: resident
                pl.BlockSpec((1, S3), lambda i: (0, 0)),    # b2: resident
            ],
            out_specs=pl.BlockSpec((TB, S3), lambda i: (i, 0)),
        ),
        compiler_params=pltpu.CompilerParams(
            dimension_semantics=("parallel",),
            vmem_limit_bytes=32 * 1024 * 1024,   # covers 2x-buffered x/out tiles on all gens
        ),
        cost_estimate=cost,
    )(x.astype(jnp.float32), w1_bf, b1r, w2r, b2r)


def init_params(key):
    """Deterministic init matching torch.nn.Linear default (U[-1/sqrt(fan_in), +1/sqrt(fan_in)])."""
    k1, k2, k3, k4 = jax.random.split(key, 4)
    bound1 = 1.0 / math.sqrt(S1)
    bound2 = 1.0 / math.sqrt(S2)
    # Stored as (in, out) -- transposed relative to PyTorch's (out, in).
    w1 = jax.random.uniform(k1, (S1, S2), jnp.float32, -bound1, bound1)
    b1 = jax.random.uniform(k2, (S2,), jnp.float32, -bound1, bound1)
    w2 = jax.random.uniform(k3, (S2, S3), jnp.float32, -bound2, bound2)
    b2 = jax.random.uniform(k4, (S3,), jnp.float32, -bound2, bound2)
    return w1, b1, w2, b2


def brain2_reference(x, w1, b1, w2, b2):
    h1 = jax.nn.sigmoid(x @ w1 + b1)
    h2 = jax.nn.sigmoid(h1 @ w2 + b2)
    return jax.nn.softmax(h2, axis=-1)


if __name__ == "__main__":
    key = jax.random.PRNGKey(0)
    kx, kp = jax.random.split(key)

    B = 8  # small smoke-test batch (real use: batch thousands of agents per call)
    x = jax.random.normal(kx, (B, S1), jnp.float32)
    w1, b1, w2, b2 = init_params(kp)

    y = brain2_forward(x, w1, b1, w2, b2)
    y = jax.block_until_ready(y)

    # Reference on the same bf16-cast MXU inputs (f32 math) so only MXU
    # accumulation-order rounding differs.
    x_b = x.astype(jnp.bfloat16).astype(jnp.float32)
    w1_b = w1.astype(jnp.bfloat16).astype(jnp.float32)
    y_ref = brain2_reference(x_b, w1_b, b1, w2, b2)

    assert y.shape == (B, S3)
    assert jnp.allclose(y, y_ref, atol=2e-3, rtol=2e-3)
    assert jnp.allclose(jnp.sum(y, axis=-1), jnp.ones((B,)), atol=1e-3)

    print("KERNEL_OK")
</pallas_src>

<mosaic_0001>
module attributes {stable_mosaic.version = 11 : i64} {
  func.func @brain2_kernel(%arg0: i32, %arg1: memref<8x606xf32, #tpu.memory_space<vmem>>, %arg2: memref<606x10xbf16, #tpu.memory_space<vmem>>, %arg3: memref<1x10xf32, #tpu.memory_space<vmem>>, %arg4: memref<10x5xf32, #tpu.memory_space<vmem>>, %arg5: memref<1x5xf32, #tpu.memory_space<vmem>>, %arg6: memref<8x5xf32, #tpu.memory_space<vmem>>) attributes {dimension_semantics = [#tpu.dimension_semantics<parallel>], iteration_bounds = array<i64: 1>, scalar_prefetch = 0 : i64, scratch_operands = 0 : i64, tpu.core_type = #tpu.core_type<tc>, window_params = [{transform_indices = @transform_0, window_bounds = array<i64: 8, 606>}, {pipeline_mode = #tpu.pipeline_mode<synchronous>, transform_indices = @transform_1, window_bounds = array<i64: 606, 10>}, {pipeline_mode = #tpu.pipeline_mode<synchronous>, transform_indices = @transform_2, window_bounds = array<i64: 1, 10>}, {pipeline_mode = #tpu.pipeline_mode<synchronous>, transform_indices = @transform_3, window_bounds = array<i64: 10, 5>}, {pipeline_mode = #tpu.pipeline_mode<synchronous>, transform_indices = @transform_4, window_bounds = array<i64: 1, 5>}, {transform_indices = @transform_5, window_bounds = array<i64: 8, 5>}]} {
    %c0 = arith.constant 0 : index
    %c0_0 = arith.constant 0 : index
    %0 = vector.load %arg1[%c0, %c0_0] : memref<8x606xf32, #tpu.memory_space<vmem>>, vector<8x606xf32>
    %1 = arith.truncf %0 : vector<8x606xf32> to vector<8x606xbf16>
    %c0_1 = arith.constant 0 : index
    %c0_2 = arith.constant 0 : index
    %2 = vector.load %arg2[%c0_1, %c0_2] : memref<606x10xbf16, #tpu.memory_space<vmem>>, vector<606x10xbf16>
    %cst = arith.constant dense<0.000000e+00> : vector<8x10xf32>
    %3 = tpu.matmul %1, %2, %cst {dimension_numbers = #tpu.dot_dimension_numbers<[1], [0], [0], [1], [0, 0, 1, 1], [], []>} : vector<8x606xbf16>, vector<606x10xbf16>, vector<8x10xf32> -> vector<8x10xf32>
    %c0_3 = arith.constant 0 : index
    %c0_4 = arith.constant 0 : index
    %4 = vector.load %arg3[%c0_3, %c0_4] : memref<1x10xf32, #tpu.memory_space<vmem>>, vector<1x10xf32>
    %5 = vector.broadcast %4 : vector<1x10xf32> to vector<8x10xf32>
    %6 = arith.addf %3, %5 : vector<8x10xf32>
    %7 = arith.negf %6 : vector<8x10xf32>
    %8 = math.exp %7 : vector<8x10xf32>
    %cst_5 = arith.constant 1.000000e+00 : f32
    %9 = vector.broadcast %cst_5 : f32 to vector<8x10xf32>
    %10 = arith.addf %9, %8 : vector<8x10xf32>
    %11 = arith.divf %9, %10 : vector<8x10xf32>
    %c0_6 = arith.constant 0 : index
    %c0_7 = arith.constant 0 : index
    %12 = vector.load %arg4[%c0_6, %c0_7] : memref<10x5xf32, #tpu.memory_space<vmem>>, vector<10x5xf32>
    %cst_8 = arith.constant dense<0.000000e+00> : vector<8x5xf32>
    %13 = tpu.matmul %11, %12, %cst_8 {dimension_numbers = #tpu.dot_dimension_numbers<[1], [0], [0], [1], [0, 0, 1, 1], [], []>} : vector<8x10xf32>, vector<10x5xf32>, vector<8x5xf32> -> vector<8x5xf32>
    %c0_9 = arith.constant 0 : index
    %c0_10 = arith.constant 0 : index
    %14 = vector.load %arg5[%c0_9, %c0_10] : memref<1x5xf32, #tpu.memory_space<vmem>>, vector<1x5xf32>
    %15 = vector.broadcast %14 : vector<1x5xf32> to vector<8x5xf32>
    %16 = arith.addf %13, %15 : vector<8x5xf32>
    %17 = arith.negf %16 : vector<8x5xf32>
    %18 = math.exp %17 : vector<8x5xf32>
    %cst_11 = arith.constant 1.000000e+00 : f32
    %19 = vector.broadcast %cst_11 : f32 to vector<8x5xf32>
    %20 = arith.addf %19, %18 : vector<8x5xf32>
    %21 = arith.divf %19, %20 : vector<8x5xf32>
    %cst_12 = arith.constant dense<0xFF800000> : vector<8xf32>
    %22 = vector.multi_reduction <maximumf>, %21, %cst_12 [1] : vector<8x5xf32> to vector<8xf32>
    %23 = vector.shape_cast %22 : vector<8xf32> to vector<8x1xf32>
    %24 = vector.broadcast %23 : vector<8x1xf32> to vector<8x5xf32>
    %25 = arith.subf %21, %24 : vector<8x5xf32>
    %26 = math.exp %25 : vector<8x5xf32>
    %cst_13 = arith.constant dense<0.000000e+00> : vector<8xf32>
    %27 = vector.multi_reduction <add>, %26, %cst_13 [1] : vector<8x5xf32> to vector<8xf32>
    %28 = vector.shape_cast %27 : vector<8xf32> to vector<8x1xf32>
    %29 = vector.broadcast %28 : vector<8x1xf32> to vector<8x5xf32>
    %30 = arith.divf %26, %29 : vector<8x5xf32>
    %c0_14 = arith.constant 0 : index
    %c0_15 = arith.constant 0 : index
    %31 = vector.load %arg6[%c0_14, %c0_15] : memref<8x5xf32, #tpu.memory_space<vmem>>, vector<8x5xf32>
    tpu.vector_store %arg6[%c0_14, %c0_15], %30 {strides = array<i32>} : memref<8x5xf32, #tpu.memory_space<vmem>>, vector<8x5xf32>,
    return
  }
  func.func @transform_0(%arg0: i32) -> (i32, i32) {
    %c0_i32 = arith.constant 0 : i32
    %c0_i32_0 = arith.constant 0 : i32
    return %arg0, %c0_i32 : i32, i32
  }
  func.func @transform_1(%arg0: i32) -> (i32, i32) {
    %c0_i32 = arith.constant 0 : i32
    %c0_i32_0 = arith.constant 0 : i32
    %c0_i32_1 = arith.constant 0 : i32
    return %c0_i32, %c0_i32_0 : i32, i32
  }
  func.func @transform_2(%arg0: i32) -> (i32, i32) {
    %c0_i32 = arith.constant 0 : i32
    %c0_i32_0 = arith.constant 0 : i32
    %c0_i32_1 = arith.constant 0 : i32
    return %c0_i32, %c0_i32_0 : i32, i32
  }
  func.func @transform_3(%arg0: i32) -> (i32, i32) {
    %c0_i32 = arith.constant 0 : i32
    %c0_i32_0 = arith.constant 0 : i32
    %c0_i32_1 = arith.constant 0 : i32
    return %c0_i32, %c0_i32_0 : i32, i32
  }
  func.func @transform_4(%arg0: i32) -> (i32, i32) {
    %c0_i32 = arith.constant 0 : i32
    %c0_i32_0 = arith.constant 0 : i32
    %c0_i32_1 = arith.constant 0 : i32
    return %c0_i32, %c0_i32_0 : i32, i32
  }
  func.func @transform_5(%arg0: i32) -> (i32, i32) {
    %c0_i32 = arith.constant 0 : i32
    %c0_i32_0 = arith.constant 0 : i32
    return %arg0, %c0_i32 : i32, i32
  }
}

</mosaic_0001>

<llo_original>
// kernel: tpu_custom_call.1
$region0: #{tpu_custom_call.1}
  #allocation0 [shape = 'u32[]', space=smem, size = 0x4, offset = 0x4, fixed_abs, tag = 'smem constant byte address 0x4 - core index']
  #allocation1 [shape = 'u32[144,128]{1,0:T(1,128)}', space=vmem, size = 0x12000, scoped, tag = 'internal scratch']
  %s0 = inlined_call_operand.vmem [shape: f32[8,606], index: 0, kind: input, shape index: {}]
  %s1 = inlined_call_operand.vmem [shape: bf16[606,10], index: 1, kind: input, shape index: {}]
  %s2 = inlined_call_operand.vmem [shape: f32[1,10], index: 2, kind: input, shape index: {}]
  %s3 = inlined_call_operand.vmem [shape: f32[10,5], index: 3, kind: input, shape index: {}]
  %s4 = inlined_call_operand.vmem [shape: f32[1,5], index: 4, kind: input, shape index: {}]
  %s5 = inlined_call_operand.hbm [shape: f32[8,5], index: 5, kind: output, shape index: {}]
  %s6 = sld [smem:[#allocation0]]
  $region30: #{tpu_custom_call.1} parent=0
    _
  %s8 = ssub.s32 1, %s6
  %s9 = scalar_select 0, %s8, %s6
  $region1: #{tpu_custom_call.1} parent=0
    #allocation2 [shape = 'u8[4096]{0}', space=vmem, size = 0x1000, scoped, tag = 'output window, operand 0, single buffered']
    #allocation3 [shape = 's32[1]{0}', space=sflag, size = 0x4, scoped, tag = 'scoped memory for tpu_custom_call.1']
    %10 = vsyncpa [#allocation3], 0
    // Predicated region
    $region2: #{tpu_custom_call.1} parent=1 // pred_check
      _
    $region3: #{tpu_custom_call.1} parent=1 // pred_check_branch
      %12 = sbr.rel (0) target = $region5
    $region4: #{tpu_custom_call.1} parent=1 // pred_region
      _
    $region5: #{tpu_custom_call.1} parent=1 // pred_fallthru
      _
    // Predicated region
    $region6: #{tpu_custom_call.1} parent=1 // pred_check
      _
    $region7: #{tpu_custom_call.1} parent=1 // pred_check_branch
      %14 = sbr.rel (0) target = $region9
    $region8: #{tpu_custom_call.1} parent=1 // pred_region
      _
    $region9: #{tpu_custom_call.1} parent=1 // pred_fallthru
      _
    // Predicated region
    $region10: #{tpu_custom_call.1} parent=1 // pred_check
      _
    $region11: #{tpu_custom_call.1} parent=1 // pred_check_branch
      %16 = sbr.rel (0) target = $region13
    $region12: #{tpu_custom_call.1} parent=1 // pred_region
      _
    $region13: #{tpu_custom_call.1} parent=1 // pred_fallthru
      _
    // Predicated region
    $region14: #{tpu_custom_call.1} parent=1 // pred_check
      _
    $region15: #{tpu_custom_call.1} parent=1 // pred_check_branch
      %18 = sbr.rel (0) target = $region17
    $region16: #{tpu_custom_call.1} parent=1 // pred_region
      _
    $region17: #{tpu_custom_call.1} parent=1 // pred_fallthru
      _
    // Predicated region
    $region18: #{tpu_custom_call.1} parent=1 // pred_check
      _
    $region19: #{tpu_custom_call.1} parent=1 // pred_check_branch
      %20 = sbr.rel (0) target = $region21
    $region20: #{tpu_custom_call.1} parent=1 // pred_region
      _
    $region21: #{tpu_custom_call.1} parent=1 // pred_fallthru
      _
    %v22 = vld [vmem:[%s0] sm:$0xff]
    %v23 = vld [vmem:[%s0 + $0x8] sm:$0xff]
    %v24 = vld [vmem:[%s0 + $0x10] sm:$0xff]
    %v25 = vld [vmem:[%s0 + $0x18] sm:$0xff]
    %v26 = vld [vmem:[%s0 + $0x20] sm:$0xff]
    %v27 = vpack.c.bf16 %v22, %v22
    %v28 = vpack.c.bf16 %v23, %v23
    %v29 = vpack.c.bf16 %v24, %v24
    %v30 = vpack.c.bf16 %v25, %v25
    %v31 = vpack.c.bf16 %v26, %v26
    %v32 = vld [vmem:[%s1] sm:$0xf]
    %v33 = vld [vmem:[%s1 + $0x4] sm:$0xf]
    %v34 = vld [vmem:[%s1 + $0x8] sm:$0xf]
    %v35 = vld [vmem:[%s1 + $0xc] sm:$0xf]
    %v36 = vld [vmem:[%s1 + $0x10] sm:$0xf]
    %v37 = vld [vmem:[%s1 + $0x14] sm:$0xf]
    %v38 = vld [vmem:[%s1 + $0x18] sm:$0xf]
    %v39 = vld [vmem:[%s1 + $0x1c] sm:$0xf]
    %v40 = vld [vmem:[%s1 + $0x20] sm:$0xf]
    %v41 = vld [vmem:[%s1 + $0x24] sm:$0xf]
    %v42 = vld [vmem:[%s1 + $0x28] sm:$0xf]
    %v43 = vld [vmem:[%s1 + $0x2c] sm:$0xf]
    %v44 = vld [vmem:[%s1 + $0x30] sm:$0xf]
    %v45 = vld [vmem:[%s1 + $0x34] sm:$0xf]
    %v46 = vld [vmem:[%s1 + $0x38] sm:$0xf]
    %v47 = vld [vmem:[%s1 + $0x3c] sm:$0xf]
    %v48 = vld [vmem:[%s1 + $0x40] sm:$0xf]
    %v49 = vld [vmem:[%s1 + $0x44] sm:$0xf]
    %v50 = vld [vmem:[%s1 + $0x48] sm:$0xf]
    %v51 = vld [vmem:[%s1 + $0x4c] sm:$0xf]
    %v52 = vld [vmem:[%s1 + $0x50] sm:$0xf]
    %v53 = vld [vmem:[%s1 + $0x54] sm:$0xf]
    %v54 = vld [vmem:[%s1 + $0x58] sm:$0xf]
    %v55 = vld [vmem:[%s1 + $0x5c] sm:$0xf]
    %v56 = vld [vmem:[%s1 + $0x60] sm:$0xf]
    %v57 = vld [vmem:[%s1 + $0x64] sm:$0xf]
    %v58 = vld [vmem:[%s1 + $0x68] sm:$0xf]
    %v59 = vld [vmem:[%s1 + $0x6c] sm:$0xf]
    %v60 = vld [vmem:[%s1 + $0x70] sm:$0xf]
    %v61 = vld [vmem:[%s1 + $0x74] sm:$0xf]
    %v62 = vld [vmem:[%s1 + $0x78] sm:$0xf]
    %v63 = vld [vmem:[%s1 + $0x7c] sm:$0xf]
    %v64 = vld [vmem:[%s1 + $0x80] sm:$0xf]
    %v65 = vld [vmem:[%s1 + $0x84] sm:$0xf]
    %v66 = vld [vmem:[%s1 + $0x88] sm:$0xf]
    %v67 = vld [vmem:[%s1 + $0x8c] sm:$0xf]
    %v68 = vld [vmem:[%s1 + $0x90] sm:$0xf]
    %v69 = vld [vmem:[%s1 + $0x94] sm:$0xf]
    %v70 = vld [vmem:[%s1 + $0x98] sm:$0xf]
    %v71 = vld [vmem:[%s1 + $0x9c] sm:$0xf]
    %v72 = vld [vmem:[%s1 + $0xa0] sm:$0xf]
    %v73 = vld [vmem:[%s1 + $0xa4] sm:$0xf]
    %v74 = vld [vmem:[%s1 + $0xa8] sm:$0xf]
    %v75 = vld [vmem:[%s1 + $0xac] sm:$0xf]
    %v76 = vld [vmem:[%s1 + $0xb0] sm:$0xf]
    %v77 = vld [vmem:[%s1 + $0xb4] sm:$0xf]
    %v78 = vld [vmem:[%s1 + $0xb8] sm:$0xf]
    %v79 = vld [vmem:[%s1 + $0xbc] sm:$0xf]
    %v80 = vld [vmem:[%s1 + $0xc0] sm:$0xf]
    %v81 = vld [vmem:[%s1 + $0xc4] sm:$0xf]
    %v82 = vld [vmem:[%s1 + $0xc8] sm:$0xf]
    %v83 = vld [vmem:[%s1 + $0xcc] sm:$0xf]
    %v84 = vld [vmem:[%s1 + $0xd0] sm:$0xf]
    %v85 = vld [vmem:[%s1 + $0xd4] sm:$0xf]
    %v86 = vld [vmem:[%s1 + $0xd8] sm:$0xf]
    %v87 = vld [vmem:[%s1 + $0xdc] sm:$0xf]
    %v88 = vld [vmem:[%s1 + $0xe0] sm:$0xf]
    %v89 = vld [vmem:[%s1 + $0xe4] sm:$0xf]
    %v90 = vld [vmem:[%s1 + $0xe8] sm:$0xf]
    %v91 = vld [vmem:[%s1 + $0xec] sm:$0xf]
    %v92 = vld [vmem:[%s1 + $0xf0] sm:$0xf]
    %v93 = vld [vmem:[%s1 + $0xf4] sm:$0xf]
    %v94 = vld [vmem:[%s1 + $0xf8] sm:$0xf]
    %v95 = vld [vmem:[%s1 + $0xfc] sm:$0xf]
    %v96 = vld [vmem:[%s1 + $0x100] sm:$0xf]
    %v97 = vld [vmem:[%s1 + $0x104] sm:$0xf]
    %v98 = vld [vmem:[%s1 + $0x108] sm:$0xf]
    %v99 = vld [vmem:[%s1 + $0x10c] sm:$0xf]
    %v100 = vld [vmem:[%s1 + $0x110] sm:$0xf]
    %v101 = vld [vmem:[%s1 + $0x114] sm:$0xf]
    %v102 = vld [vmem:[%s1 + $0x118] sm:$0xf]
    %v103 = vld [vmem:[%s1 + $0x11c] sm:$0xf]
    %v104 = vld [vmem:[%s1 + $0x120] sm:$0xf]
    %v105 = vld [vmem:[%s1 + $0x124] sm:$0xf]
    %v106 = vld [vmem:[%s1 + $0x128] sm:$0xf]
    %v107 = vld [vmem:[%s1 + $0x12c] sm:$0x7]
    %v108 = vld [vmem:[%s2] sm:$0x1]
    %v110 = vlaneseq
    %v111 = vshrl.u32 %v110, 7
    %v112 = vsub.s32 0, %v111
    %v113 = vrot.slane %v108, %v112
    %v191 = vunpack.c.l.b16 %v32
    %v192 = vunpack.c.l.b16 %v33
    %v193 = vunpack.c.l.b16 %v34
    %v194 = vunpack.c.l.b16 %v35
    %v195 = vunpack.c.l.b16 %v36
    %v196 = vunpack.c.l.b16 %v37
    %v197 = vunpack.c.l.b16 %v38
    %v198 = vunpack.c.l.b16 %v39
    %v199 = vunpack.c.l.b16 %v40
    %v200 = vunpack.c.l.b16 %v41
    %v201 = vunpack.c.l.b16 %v42
    %v202 = vunpack.c.l.b16 %v43
    %v203 = vunpack.c.l.b16 %v44
    %v204 = vunpack.c.l.b16 %v45
    %v205 = vunpack.c.l.b16 %v46
    %v206 = vunpack.c.l.b16 %v47
    %v207 = vunpack.c.l.b16 %v48
    %v208 = vunpack.c.l.b16 %v49
    %v209 = vunpack.c.l.b16 %v50
    %v210 = vunpack.c.l.b16 %v51
    %v211 = vunpack.c.l.b16 %v52
    %v212 = vunpack.c.l.b16 %v53
    %v213 = vunpack.c.l.b16 %v54
    %v214 = vunpack.c.l.b16 %v55
    %v215 = vunpack.c.l.b16 %v56
    %v216 = vunpack.c.l.b16 %v57
    %v217 = vunpack.c.l.b16 %v58
    %v218 = vunpack.c.l.b16 %v59
    %v219 = vunpack.c.l.b16 %v60
    %v220 = vunpack.c.l.b16 %v61
    %v221 = vunpack.c.l.b16 %v62
    %v222 = vunpack.c.l.b16 %v63
    %v223 = vunpack.c.l.b16 %v64
    %v224 = vunpack.c.l.b16 %v65
    %v225 = vunpack.c.l.b16 %v66
    %v226 = vunpack.c.l.b16 %v67
    %v227 = vunpack.c.l.b16 %v68
    %v228 = vunpack.c.l.b16 %v69
    %v229 = vunpack.c.l.b16 %v70
    %v230 = vunpack.c.l.b16 %v71
    %v231 = vunpack.c.l.b16 %v72
    %v232 = vunpack.c.l.b16 %v73
    %v233 = vunpack.c.l.b16 %v74
    %v234 = vunpack.c.l.b16 %v75
    %v235 = vunpack.c.l.b16 %v76
    %v236 = vunpack.c.l.b16 %v77
    %v237 = vunpack.c.l.b16 %v78
    %v238 = vunpack.c.l.b16 %v79
    %v239 = vunpack.c.l.b16 %v80
    %v240 = vunpack.c.l.b16 %v81
    %v241 = vunpack.c.l.b16 %v82
    %v242 = vunpack.c.l.b16 %v83
    %v243 = vunpack.c.l.b16 %v84
    %v244 = vunpack.c.l.b16 %v85
    %v245 = vunpack.c.l.b16 %v86
    %v246 = vunpack.c.l.b16 %v87
    %v247 = vunpack.c.l.b16 %v88
    %v248 = vunpack.c.l.b16 %v89
    %v249 = vunpack.c.l.b16 %v90
    %v250 = vunpack.c.l.b16 %v91
    %v251 = vunpack.c.l.b16 %v92
    %v252 = vunpack.c.l.b16 %v93
    %v253 = vunpack.c.l.b16 %v94
    %v254 = vunpack.c.l.b16 %v95
    %v255 = vunpack.c.l.b16 %v96
    %v256 = vunpack.c.l.b16 %v97
    %v257 = vunpack.c.l.b16 %v98
    %v258 = vunpack.c.l.b16 %v99
    %v259 = vunpack.c.l.b16 %v100
    %v260 = vunpack.c.l.b16 %v101
    %v261 = vunpack.c.l.b16 %v102
    %v262 = vunpack.c.l.b16 %v103
    %v263 = vunpack.c.l.b16 %v104
    %v264 = vunpack.c.l.b16 %v105
    %v265 = vunpack.c.l.b16 %v106
    %v266 = vunpack.c.l.b16 %v107
    %v267 = vpack.c.b16 %v192, %v191
    %v268 = vpack.c.b16 %v194, %v193
    %v269 = vpack.c.b16 %v196, %v195
    %v270 = vpack.c.b16 %v198, %v197
    %v271 = vpack.c.b16 %v200, %v199
    %v272 = vpack.c.b16 %v202, %v201
    %v273 = vpack.c.b16 %v204, %v203
    %v274 = vpack.c.b16 %v206, %v205
    %v275 = vpack.c.b16 %v208, %v207
    %v276 = vpack.c.b16 %v210, %v209
    %v277 = vpack.c.b16 %v212, %v211
    %v278 = vpack.c.b16 %v214, %v213
    %v279 = vpack.c.b16 %v216, %v215
    %v280 = vpack.c.b16 %v218, %v217
    %v281 = vpack.c.b16 %v220, %v219
    %v282 = vpack.c.b16 %v222, %v221
    %v283 = vpack.c.b16 %v224, %v223
    %v284 = vpack.c.b16 %v226, %v225
    %v285 = vpack.c.b16 %v228, %v227
    %v286 = vpack.c.b16 %v230, %v229
    %v287 = vpack.c.b16 %v232, %v231
    %v288 = vpack.c.b16 %v234, %v233
    %v289 = vpack.c.b16 %v236, %v235
    %v290 = vpack.c.b16 %v238, %v237
    %v291 = vpack.c.b16 %v240, %v239
    %v292 = vpack.c.b16 %v242, %v241
    %v293 = vpack.c.b16 %v244, %v243
    %v294 = vpack.c.b16 %v246, %v245
    %v295 = vpack.c.b16 %v248, %v247
    %v296 = vpack.c.b16 %v250, %v249
    %v297 = vpack.c.b16 %v252, %v251
    %v298 = vpack.c.b16 %v254, %v253
    %v299 = vpack.c.b16 %v256, %v255
    %v300 = vpack.c.b16 %v258, %v257
    %v301 = vpack.c.b16 %v260, %v259
    %v302 = vpack.c.b16 %v262, %v261
    %v303 = vpack.c.b16 %v264, %v263
    %v304 = vpack.c.b16 %v266, %v265
    %vm342 = vcmask 769024
    %v344 = vsel %vm342, %v31, 0
    %vm346 = vcmask 1046528
    %v348 = vsel %vm346, %v304, 0
    %350 = vmatprep.subr.bf16.mxu0 0
    %351 = vmatpush1.bf16.msra.mxu0 %v267
    %352 = vmatprep.subr.bf16.mxu0 0
    %353 = vmatpush1.bf16.msra.mxu0 %v268
    %354 = vmatprep.subr.bf16.mxu0 0
    %355 = vmatpush1.bf16.msra.mxu0 %v269
    %356 = vmatprep.subr.bf16.mxu0 0
    %357 = vmatpush1.bf16.msra.mxu0 %v270
    %358 = vmatprep.subr.bf16.mxu0 0
    %359 = vmatpush1.bf16.msra.mxu0 %v271
    %360 = vmatprep.subr.bf16.mxu0 0
    %361 = vmatpush1.bf16.msra.mxu0 %v272
    %362 = vmatprep.subr.bf16.mxu0 0
    %363 = vmatpush1.bf16.msra.mxu0 %v273
    %364 = vmatprep.subr.bf16.mxu0 0
    %365 = vmatpush1.bf16.msra.mxu0 %v274
    %366 = vmatprep.subr.bf16.mxu0 0
    %367 = vmatpush1.bf16.msra.mxu0 %v275
    %368 = vmatprep.subr.bf16.mxu0 0
    %369 = vmatpush1.bf16.msra.mxu0 %v276
    %370 = vmatprep.subr.bf16.mxu0 0
    %371 = vmatpush1.bf16.msra.mxu0 %v277
    %372 = vmatprep.subr.bf16.mxu0 0
    %373 = vmatpush1.bf16.msra.mxu0 %v278
    %374 = vmatprep.subr.bf16.mxu0 0
    %375 = vmatpush1.bf16.msra.mxu0 %v279
    %376 = vmatprep.subr.bf16.mxu0 0
    %377 = vmatpush1.bf16.msra.mxu0 %v280
    %378 = vmatprep.subr.bf16.mxu0 0
    %379 = vmatpush1.bf16.msra.mxu0 %v281
    %380 = vmatprep.subr.bf16.mxu0 0
    %381 = vmatpush1.bf16.msra.mxu0 %v282
    %382 = vmatprep.mubr.bf16.mxu0 %v28
    %383 = vmatmul.mubr.bf16.gmra.mrb[0].mxu0 %v27
    %v384 = vpop.f32.mrb[0].mxu0
    %v385 = vadd.f32 %v113, %v384
    %v386 = vpop.f32.mrb[0].mxu0
    %v387 = vpop.f32.mrb[0].mxu0
    %v388 = vpop.f32.mrb[0].mxu0
    %389 = vdwg.mxu0
    %390 = vmatprep.subr.bf16.mxu0 0
    %391 = vmatpush1.bf16.msra.mxu0 %v283
    %392 = vmatprep.subr.bf16.mxu0 0
    %393 = vmatpush1.bf16.msra.mxu0 %v284
    %394 = vmatprep.subr.bf16.mxu0 0
    %395 = vmatpush1.bf16.msra.mxu0 %v285
    %396 = vmatprep.subr.bf16.mxu0 0
    %397 = vmatpush1.bf16.msra.mxu0 %v286
    %398 = vmatprep.subr.bf16.mxu0 0
    %399 = vmatpush1.bf16.msra.mxu0 %v287
    %400 = vmatprep.subr.bf16.mxu0 0
    %401 = vmatpush1.bf16.msra.mxu0 %v288
    %402 = vmatprep.subr.bf16.mxu0 0
    %403 = vmatpush1.bf16.msra.mxu0 %v289
    %404 = vmatprep.subr.bf16.mxu0 0
    %405 = vmatpush1.bf16.msra.mxu0 %v290
    %406 = vmatprep.subr.bf16.mxu0 0
    %407 = vmatpush1.bf16.msra.mxu0 %v291
    %408 = vmatprep.subr.bf16.mxu0 0
    %409 = vmatpush1.bf16.msra.mxu0 %v292
    %410 = vmatprep.subr.bf16.mxu0 0
    %411 = vmatpush1.bf16.msra.mxu0 %v293
    %412 = vmatprep.subr.bf16.mxu0 0
    %413 = vmatpush1.bf16.msra.mxu0 %v294
    %414 = vmatprep.subr.bf16.mxu0 0
    %415 = vmatpush1.bf16.msra.mxu0 %v295
    %416 = vmatprep.subr.bf16.mxu0 0
    %417 = vmatpush1.bf16.msra.mxu0 %v296
    %418 = vmatprep.subr.bf16.mxu0 0
    %419 = vmatpush1.bf16.msra.mxu0 %v297
    %420 = vmatprep.subr.bf16.mxu0 0
    %421 = vmatpush1.bf16.msra.mxu0 %v298
    %422 = vmatprep.mubr.bf16.mxu0 %v30
    %423 = vmatmul.mubr.bf16.gmra.mrb[0].mxu0 %v29
    %v424 = vpop.f32.mrb[0].mxu0
    %v425 = vadd.f32 %v385, %v424
    %v426 = vpop.f32.mrb[0].mxu0
    %v427 = vpop.f32.mrb[0].mxu0
    %v428 = vpop.f32.mrb[0].mxu0
    %429 = vdwg.mxu0
    %430 = vmatprep.subr.bf16.mxu0 0
    %431 = vmatpush1.bf16.msra.mxu0 %v299
    %432 = vmatprep.subr.bf16.mxu0 0
    %433 = vmatpush1.bf16.msra.mxu0 %v300
    %434 = vmatprep.subr.bf16.mxu0 0
    %435 = vmatpush1.bf16.msra.mxu0 %v301
    %436 = vmatprep.subr.bf16.mxu0 0
    %437 = vmatpush1.bf16.msra.mxu0 %v302
    %438 = vmatprep.subr.bf16.mxu0 0
    %439 = vmatpush1.bf16.msra.mxu0 %v303
    %440 = vmatprep.subr.bf16.mxu0 0
    %441 = vmatpush1.bf16.msra.mxu0 %v348
    %442 = vmatprep.subr.bf16.mxu0 0
    %443 = vmatpush1.bf16.msra.mxu0 0
    %444 = vmatprep.subr.bf16.mxu0 0
    %445 = vmatpush1.bf16.msra.mxu0 0
    %446 = vmatprep.subr.bf16.mxu0 0
    %447 = vmatpush1.bf16.msra.mxu0 0
    %448 = vmatprep.subr.bf16.mxu0 0
    %449 = vmatpush1.bf16.msra.mxu0 0
    %450 = vmatprep.subr.bf16.mxu0 0
    %451 = vmatpush1.bf16.msra.mxu0 0
    %452 = vmatprep.subr.bf16.mxu0 0
    %453 = vmatpush1.bf16.msra.mxu0 0
    %454 = vmatprep.subr.bf16.mxu0 0
    %455 = vmatpush1.bf16.msra.mxu0 0
    %456 = vmatprep.subr.bf16.mxu0 0
    %457 = vmatpush1.bf16.msra.mxu0 0
    %458 = vmatprep.subr.bf16.mxu0 0
    %459 = vmatpush1.bf16.msra.mxu0 0
    %460 = vmatprep.subr.bf16.mxu0 0
    %461 = vmatpush1.bf16.msra.mxu0 0
    %462 = vmatprep.mubr.bf16.mxu0 0
    %463 = vmatmul.mubr.bf16.gmra.mrb[0].mxu0 %v344
    %v464 = vpop.f32.mrb[0].mxu0
    %v465 = vadd.f32 %v425, %v464
    %v466 = vpop.f32.mrb[0].mxu0
    %v467 = vpop.f32.mrb[0].mxu0
    %v468 = vpop.f32.mrb[0].mxu0
    %469 = vdwg.mxu0
    %v470 = vxor.u32 %v465, 2147483648
    %v471 = vmul.f32 %v470, 1.442695
    %v472 = vpow.pop %v471
    %v473 = vadd.f32 %v472, 1.0
    %v474 = vrcp.pop %v473
    %v475 = vmul.f32 1.0, %v474
    %v476 = vld [vmem:[%s3] sm:$0xff]
    %v477 = vld [vmem:[%s3 + $0x8] sm:$0x3]
    %v478 = vld [vmem:[%s4] sm:$0x1]
    %v480 = vlaneseq
    %v481 = vshrl.u32 %v480, 7
    %v482 = vsub.s32 0, %v481
    %v483 = vrot.slane %v478, %v482
    %vm485 = vcmask 80896
    %v487 = vsel %vm485, %v475, 0
    %vm489 = vcmask 1041408
    %v491 = vsel %vm489, %v477, 0
    %493 = vmatprep.subr.mxu0 0.0
    %494 = vmatpush1.msra.mxu0 %v476
    %495 = vmatprep.subr.mxu0 0.0
    %496 = vmatpush1.msra.mxu0 %v491
    %497 = vmatprep.subr.mxu0 0.0
    %498 = vmatpush1.msra.mxu0 0.0
    %499 = vmatprep.subr.mxu0 0.0
    %500 = vmatpush1.msra.mxu0 0.0
    %501 = vmatprep.subr.mxu0 0.0
    %502 = vmatpush1.msra.mxu0 0.0
    %503 = vmatprep.subr.mxu0 0.0
    %504 = vmatpush1.msra.mxu0 0.0
    %505 = vmatprep.subr.mxu0 0.0
    %506 = vmatpush1.msra.mxu0 0.0
    %507 = vmatprep.subr.mxu0 0.0
    %508 = vmatpush1.msra.mxu0 0.0
    %509 = vmatprep.subr.mxu0 0.0
    %510 = vmatpush1.msra.mxu0 0.0
    %511 = vmatprep.subr.mxu0 0.0
    %512 = vmatpush1.msra.mxu0 0.0
    %513 = vmatprep.subr.mxu0 0.0
    %514 = vmatpush1.msra.mxu0 0.0
    %515 = vmatprep.subr.mxu0 0.0
    %516 = vmatpush1.msra.mxu0 0.0
    %517 = vmatprep.subr.mxu0 0.0
    %518 = vmatpush1.msra.mxu0 0.0
    %519 = vmatprep.subr.mxu0 0.0
    %520 = vmatpush1.msra.mxu0 0.0
    %521 = vmatprep.subr.mxu0 0.0
    %522 = vmatpush1.msra.mxu0 0.0
    %523 = vmatprep.subr.mxu0 0.0
    %524 = vmatpush1.msra.mxu0 0.0
    %525 = vmatprep.subr.mxu0 0.0
    %526 = vmatpush1.msra.mxu0 0.0
    %527 = vmatprep.subr.mxu0 0.0
    %528 = vmatpush1.msra.mxu0 0.0
    %529 = vmatprep.subr.mxu0 0.0
    %530 = vmatpush1.msra.mxu0 0.0
    %531 = vmatprep.subr.mxu0 0.0
    %532 = vmatpush1.msra.mxu0 0.0
    %533 = vmatprep.subr.mxu0 0.0
    %534 = vmatpush1.msra.mxu0 0.0
    %535 = vmatprep.subr.mxu0 0.0
    %536 = vmatpush1.msra.mxu0 0.0
    %537 = vmatprep.subr.mxu0 0.0
    %538 = vmatpush1.msra.mxu0 0.0
    %539 = vmatprep.subr.mxu0 0.0
    %540 = vmatpush1.msra.mxu0 0.0
    %541 = vmatprep.subr.mxu0 0.0
    %542 = vmatpush1.msra.mxu0 0.0
    %543 = vmatprep.subr.mxu0 0.0
    %544 = vmatpush1.msra.mxu0 0.0
    %545 = vmatprep.subr.mxu0 0.0
    %546 = vmatpush1.msra.mxu0 0.0
    %547 = vmatprep.subr.mxu0 0.0
    %548 = vmatpush1.msra.mxu0 0.0
    %549 = vmatprep.subr.mxu0 0.0
    %550 = vmatpush1.msra.mxu0 0.0
    %551 = vmatprep.subr.mxu0 0.0
    %552 = vmatpush1.msra.mxu0 0.0
    %553 = vmatprep.subr.mxu0 0.0
    %554 = vmatpush1.msra.mxu0 0.0
    %555 = vmatprep.subr.mxu0 0.0
    %556 = vmatpush1.msra.mxu0 0.0
    %557 = vmatprep.mubr.f32.mxu0 0.0
    %558 = vmatmul.mubr.f32.gmra.mrb[0].mxu0 %v487
    %v559 = vpop.f32.mrb[0].mxu0
    %v560 = vadd.f32 %v483, %v559
    %v561 = vpop.f32.mrb[0].mxu0
    %562 = vdwg.mxu0
    %v563 = vxor.u32 %v560, 2147483648
    %v564 = vmul.f32 %v563, 1.442695
    %v565 = vpow.pop %v564
    %v566 = vadd.f32 %v565, 1.0
    %v567 = vrcp.pop %v566
    %v568 = vmul.f32 1.0, %v567
    %vm569 = vcmask 39936
    %v570 = vsel %vm569, %v568, -inf
    %571 = vmax.xlane.f32.xlu0 %v570
    %v572 = vpop.xlane.xlu0 %571
    %v573 = vsub.f32 %v568, %v572
    %v574 = vmul.f32 %v573, 1.442695
    %v575 = vpow.pop %v574
    %v576 = vsel %vm569, %v575, 0.0
    %577 = vadd.xlane.f32.xlu0 %v576
    %v578 = vpop.xlane.xlu0 %577
    %v579 = vrcp.pop %v578
    %v580 = vmul.f32 %v575, %v579
    %581 = vst.msk [vmem:[#allocation2] sm:$0xff] %vm569, %v580
    // Predicated region
    $region22: #{tpu_custom_call.1} parent=1 // pred_check
      _
    $region23: #{tpu_custom_call.1} parent=1 // pred_check_branch
      %583 = sbr.rel (0) target = $region25
    $region24: #{tpu_custom_call.1} parent=1 // pred_region
      %s585 = ssub.s32 128, 128
      %586 = vsyncadd [#allocation3], %s585
      %s588 = sshll.u32 [#allocation2], 4
      %s589 = int_to_ptr.vmem [resolvable:$true] %s588
      %591 = dma.vmem_to_hbm [thread:$0]  %s589, 128, %s5, [#allocation3]
    $region25: #{tpu_custom_call.1} parent=1 // pred_fallthru
      _
    // Predicated region
    $region26: #{tpu_custom_call.1} parent=1 // pred_check
      _
    $region27: #{tpu_custom_call.1} parent=1 // pred_check_branch
      %593 = sbr.rel (0) target = $region29
    $region28: #{tpu_custom_call.1} parent=1 // pred_region
      %594 = dma.done [#allocation3], 128
    $region29: #{tpu_custom_call.1} parent=1 // pred_fallthru
      _
    %595 = vsyncpa [#allocation3], 1

</llo_original>
